<compile_context>
chip_gen: v6e
topology: v6e:2x2x1
jax: 0.10.0
libtpu: 0.0.40
codegen_flags: <defaults>
</compile_context>

<pallas_src>
import functools

import jax
import jax.numpy as jnp
from jax import lax
from jax.experimental import pallas as pl
from jax.experimental.pallas import tpu as pltpu


# ----------------------------------------------------------------------------
# Kernel: one (TM, M) row-tile runs the full Euler loop + denorm epilogue
# ----------------------------------------------------------------------------
def _reflow_euler_sample_kernel(x0_ref, cond_ref, wx_ref, wc_ref, bias_ref,
                                o_ref, *, infer_step, t_start, dt,
                                out_scale, out_shift, unroll):
    """x0:(TM,M) f32  cond:(TM,C) f32  wx:(M,M) bf16  wc:(C,M) bf16
    bias:(1,M) f32  o:(TM,M) f32."""
    # Weights loaded once; constant index_maps keep them resident across the
    # row-tile grid (no re-DMA).  bf16 halves the Wx vreg footprint.
    wx = wx_ref[...]                                            # bf16 (M, M)

    # Loop-invariant conditioning projection, hoisted out of the Euler loop.
    cond_proj = jnp.dot(cond_ref[...].astype(jnp.bfloat16), wc_ref[...],
                        preferred_element_type=jnp.float32) + bias_ref[...]

    def body(step, x):
        # Inference-time t is identical across the batch; velocity_fn is
        # called with 1000*t and scales internally by 0.001, i.e. "+ t".
        t = t_start + dt * jnp.asarray(step, jnp.float32)
        # bf16 only at the MXU inputs (full-rate matmul, f32 accumulation);
        # all VPU/EUP arithmetic and the carried state stay f32.
        v = jnp.tanh(jnp.dot(x.astype(jnp.bfloat16), wx,
                             preferred_element_type=jnp.float32)
                     + cond_proj + t)
        return x + dt * v                          # Euler: x <- x + dt * v

    x = lax.fori_loop(0, infer_step, body, x0_ref[...], unroll=unroll)

    # Fused denorm_spec epilogue, constants folded at trace time:
    #   (x + 1)/2*(max - min) + min  ==  x*out_scale + out_shift.
    o_ref[...] = x * out_scale + out_shift


# ----------------------------------------------------------------------------
# Wrapper
# ----------------------------------------------------------------------------
@functools.partial(
    jax.jit,
    static_argnames=("out_dims", "infer_step", "t_start", "spec_min",
                     "spec_max", "tile_rows"))
def rectified_flow_forward(condition, params, noise_key, *, out_dims=128,
                           infer_step=10, t_start=0.0, spec_min=-12.0,
                           spec_max=2.0, tile_rows=256):
    """RectifiedFlow.forward with infer=True, gt_spec=None, method='euler'.

    condition: (B, T, C) float32  (== PyTorch `condition` of shape (B, T, C))
    returns  : (B, T, out_dims) float32  (== PyTorch output shape)
    """
    t_start = min(max(float(t_start), 0.0), 1.0)
    dt = (1.0 - t_start) / infer_step
    out_scale = 0.5 * (float(spec_max) - float(spec_min))
    out_shift = out_scale + float(spec_min)

    B, T, C = condition.shape
    M = int(out_dims)
    BT = B * T

    wx, wc, bias = params
    # MXU inputs in bf16 (accumulation stays f32 inside the kernel).
    wx = wx.astype(jnp.bfloat16)
    wc = wc.astype(jnp.bfloat16)
    bias = bias.astype(jnp.float32).reshape(1, M)

    # Row-tile over the flattened B*T rows: multiple of 8 sublanes; pad so
    # every grid step sees a full (TM, M) block.
    TM = max(8, min(int(tile_rows), BT))
    TM = ((TM + 7) // 8) * 8
    n_tiles = -(-BT // TM)                  # cdiv
    BT_pad = n_tiles * TM

    # x ~ N(0,1); PyTorch draws shape (B, 1, out_dims, T), here (BT_pad, M) —
    # i.i.d. Gaussian either way, only the sample layout / RNG stream differ.
    x0 = jax.random.normal(noise_key, (BT_pad, M), dtype=jnp.float32)

    cond = condition.reshape(BT, C).astype(jnp.float32)
    if BT_pad != BT:
        cond = jnp.pad(cond, ((0, BT_pad - BT), (0, 0)))

    kernel = functools.partial(
        _reflow_euler_sample_kernel,
        infer_step=int(infer_step), t_start=float(t_start), dt=float(dt),
        out_scale=out_scale, out_shift=out_shift,
        unroll=bool(int(infer_step) <= 16))

    out = pl.pallas_call(
        kernel,
        out_shape=jax.ShapeDtypeStruct((BT_pad, M), jnp.float32),
        grid=(n_tiles,),
        in_specs=[
            pl.BlockSpec((TM, M), lambda i: (i, 0)),   # x0 noise tile
            pl.BlockSpec((TM, C), lambda i: (i, 0)),   # cond tile
            pl.BlockSpec((M, M), lambda i: (0, 0)),    # Wx   (resident)
            pl.BlockSpec((C, M), lambda i: (0, 0)),    # Wc   (resident)
            pl.BlockSpec((1, M), lambda i: (0, 0)),    # bias (resident)
        ],
        out_specs=pl.BlockSpec((TM, M), lambda i: (i, 0)),
        input_output_aliases={0: 0},                   # out reuses x0's HBM
        compiler_params=pltpu.CompilerParams(
            dimension_semantics=("parallel",)),        # 2 TCs on v7x
    )(x0, cond, wx, wc, bias)

    # PyTorch: x.squeeze(1).transpose(1, 2) -> (B, T, out_dims); our layout is
    # already channels-last, so only drop the row padding and reshape back.
    return out[:BT].reshape(B, T, M)


# ----------------------------------------------------------------------------
# Pure-JAX reference (same math, for a correctness cross-check)
# ----------------------------------------------------------------------------
def _reference_forward(condition, params, x0, *, infer_step, t_start, dt,
                       spec_min, spec_max):
    wx, wc, bias = params
    B, T, C = condition.shape
    M = x0.shape[-1]
    cond = condition.reshape(B * T, C)
    cond_proj = (jnp.dot(cond.astype(jnp.bfloat16), wc.astype(jnp.bfloat16),
                         preferred_element_type=jnp.float32)
                 + bias.reshape(1, M).astype(jnp.float32))
    x = x0[:B * T]
    for step in range(infer_step):
        t = t_start + dt * step
        v = jnp.tanh(jnp.dot(x.astype(jnp.bfloat16), wx.astype(jnp.bfloat16),
                             preferred_element_type=jnp.float32)
                     + cond_proj + t)
        x = x + dt * v
    x = (x + 1.0) * 0.5 * (spec_max - spec_min) + spec_min
    return x.reshape(B, T, M)


# ----------------------------------------------------------------------------
# Main
# ----------------------------------------------------------------------------
if __name__ == "__main__":
    B, T, C = 2, 16, 32        # batch, frames, encoder-hidden
    OUT_DIMS = 128             # mel bins (module default)
    INFER_STEP = 10
    T_START, SPEC_MIN, SPEC_MAX = 0.0, -12.0, 2.0
    TILE_ROWS = 16             # small tile so the demo exercises a >1 grid

    key = jax.random.PRNGKey(0)
    k_cond, k_wx, k_wc, k_b, k_noise = jax.random.split(key, 5)

    condition = jax.random.normal(k_cond, (B, T, C), dtype=jnp.float32)

    # Deterministic synthetic velocity-network parameters.
    wx = 0.05 * jax.random.normal(k_wx, (OUT_DIMS, OUT_DIMS), dtype=jnp.float32)
    wc = 0.05 * jax.random.normal(k_wc, (C, OUT_DIMS), dtype=jnp.float32)
    bias = 0.01 * jax.random.normal(k_b, (1, OUT_DIMS), dtype=jnp.float32)

    out = rectified_flow_forward(
        condition, (wx, wc, bias), k_noise,
        out_dims=OUT_DIMS, infer_step=INFER_STEP, t_start=T_START,
        spec_min=SPEC_MIN, spec_max=SPEC_MAX, tile_rows=TILE_ROWS)
    out = jax.block_until_ready(out)

    assert out.shape == (B, T, OUT_DIMS), out.shape
    assert bool(jnp.all(jnp.isfinite(out)))

    # Cross-check against the pure-JAX reference (same noise stream: BT is a
    # multiple of TILE_ROWS here, so no padding rows were added).
    dt = (1.0 - T_START) / INFER_STEP
    x0_host = jax.random.normal(k_noise, (B * T, OUT_DIMS), dtype=jnp.float32)
    ref = _reference_forward(condition, (wx, wc, bias), x0_host,
                             infer_step=INFER_STEP, t_start=T_START, dt=dt,
                             spec_min=SPEC_MIN, spec_max=SPEC_MAX)
    assert bool(jnp.allclose(out, ref, atol=5e-2)), float(
        jnp.max(jnp.abs(out - ref)))

    print("KERNEL_OK")
</pallas_src>

<mosaic_0001>
module attributes {stable_mosaic.version = 11 : i64} {
  func.func @_reflow_euler_sample_kernel(%arg0: i32, %arg1: memref<16x128xf32, #tpu.memory_space<vmem>>, %arg2: memref<16x32xf32, #tpu.memory_space<vmem>>, %arg3: memref<128x128xbf16, #tpu.memory_space<vmem>>, %arg4: memref<32x128xbf16, #tpu.memory_space<vmem>>, %arg5: memref<1x128xf32, #tpu.memory_space<vmem>>, %arg6: memref<16x128xf32, #tpu.memory_space<vmem>>) attributes {dimension_semantics = [#tpu.dimension_semantics<parallel>], iteration_bounds = array<i64: 2>, scalar_prefetch = 0 : i64, scratch_operands = 0 : i64, tpu.core_type = #tpu.core_type<tc>, window_params = [{transform_indices = @transform_0, window_bounds = array<i64: 16, 128>}, {transform_indices = @transform_1, window_bounds = array<i64: 16, 32>}, {pipeline_mode = #tpu.pipeline_mode<synchronous>, transform_indices = @transform_2, window_bounds = array<i64: 128, 128>}, {pipeline_mode = #tpu.pipeline_mode<synchronous>, transform_indices = @transform_3, window_bounds = array<i64: 32, 128>}, {pipeline_mode = #tpu.pipeline_mode<synchronous>, transform_indices = @transform_4, window_bounds = array<i64: 1, 128>}, {transform_indices = @transform_5, window_bounds = array<i64: 16, 128>}]} {
    %c0 = arith.constant 0 : index
    %c0_0 = arith.constant 0 : index
    %0 = vector.load %arg3[%c0, %c0_0] : memref<128x128xbf16, #tpu.memory_space<vmem>>, vector<128x128xbf16>
    %c0_1 = arith.constant 0 : index
    %c0_2 = arith.constant 0 : index
    %1 = vector.load %arg2[%c0_1, %c0_2] : memref<16x32xf32, #tpu.memory_space<vmem>>, vector<16x32xf32>
    %2 = arith.truncf %1 : vector<16x32xf32> to vector<16x32xbf16>
    %c0_3 = arith.constant 0 : index
    %c0_4 = arith.constant 0 : index
    %3 = vector.load %arg4[%c0_3, %c0_4] : memref<32x128xbf16, #tpu.memory_space<vmem>>, vector<32x128xbf16>
    %cst = arith.constant dense<0.000000e+00> : vector<16x128xf32>
    %4 = tpu.matmul %2, %3, %cst {dimension_numbers = #tpu.dot_dimension_numbers<[1], [0], [0], [1], [0, 0, 1, 1], [], []>} : vector<16x32xbf16>, vector<32x128xbf16>, vector<16x128xf32> -> vector<16x128xf32>
    %c0_5 = arith.constant 0 : index
    %c0_6 = arith.constant 0 : index
    %5 = vector.load %arg5[%c0_5, %c0_6] : memref<1x128xf32, #tpu.memory_space<vmem>>, vector<1x128xf32>
    %6 = vector.broadcast %5 : vector<1x128xf32> to vector<16x128xf32>
    %7 = arith.addf %4, %6 : vector<16x128xf32>
    %c0_7 = arith.constant 0 : index
    %c0_8 = arith.constant 0 : index
    %8 = vector.load %arg1[%c0_7, %c0_8] : memref<16x128xf32, #tpu.memory_space<vmem>>, vector<16x128xf32>
    %c0_i32 = arith.constant 0 : i32
    %9 = arith.sitofp %c0_i32 : i32 to f32
    %cst_9 = arith.constant 1.000000e-01 : f32
    %10 = arith.mulf %cst_9, %9 : f32
    %cst_10 = arith.constant 0.000000e+00 : f32
    %11 = arith.addf %cst_10, %10 : f32
    %12 = arith.truncf %8 : vector<16x128xf32> to vector<16x128xbf16>
    %cst_11 = arith.constant dense<0.000000e+00> : vector<16x128xf32>
    %13 = tpu.matmul %12, %0, %cst_11 {dimension_numbers = #tpu.dot_dimension_numbers<[1], [0], [0], [1], [0, 0, 1, 1], [], []>} : vector<16x128xbf16>, vector<128x128xbf16>, vector<16x128xf32> -> vector<16x128xf32>
    %14 = arith.addf %13, %7 : vector<16x128xf32>
    %15 = vector.broadcast %11 : f32 to vector<16x128xf32>
    %16 = arith.addf %14, %15 : vector<16x128xf32>
    %17 = math.tanh %16 : vector<16x128xf32>
    %cst_12 = arith.constant 1.000000e-01 : f32
    %18 = vector.broadcast %cst_12 : f32 to vector<16x128xf32>
    %19 = arith.mulf %18, %17 : vector<16x128xf32>
    %20 = arith.addf %8, %19 : vector<16x128xf32>
    %c1_i32 = arith.constant 1 : i32
    %21 = arith.sitofp %c1_i32 : i32 to f32
    %cst_13 = arith.constant 1.000000e-01 : f32
    %22 = arith.mulf %cst_13, %21 : f32
    %cst_14 = arith.constant 0.000000e+00 : f32
    %23 = arith.addf %cst_14, %22 : f32
    %24 = arith.truncf %20 : vector<16x128xf32> to vector<16x128xbf16>
    %cst_15 = arith.constant dense<0.000000e+00> : vector<16x128xf32>
    %25 = tpu.matmul %24, %0, %cst_15 {dimension_numbers = #tpu.dot_dimension_numbers<[1], [0], [0], [1], [0, 0, 1, 1], [], []>} : vector<16x128xbf16>, vector<128x128xbf16>, vector<16x128xf32> -> vector<16x128xf32>
    %26 = arith.addf %25, %7 : vector<16x128xf32>
    %27 = vector.broadcast %23 : f32 to vector<16x128xf32>
    %28 = arith.addf %26, %27 : vector<16x128xf32>
    %29 = math.tanh %28 : vector<16x128xf32>
    %cst_16 = arith.constant 1.000000e-01 : f32
    %30 = vector.broadcast %cst_16 : f32 to vector<16x128xf32>
    %31 = arith.mulf %30, %29 : vector<16x128xf32>
    %32 = arith.addf %20, %31 : vector<16x128xf32>
    %c2_i32 = arith.constant 2 : i32
    %33 = arith.sitofp %c2_i32 : i32 to f32
    %cst_17 = arith.constant 1.000000e-01 : f32
    %34 = arith.mulf %cst_17, %33 : f32
    %cst_18 = arith.constant 0.000000e+00 : f32
    %35 = arith.addf %cst_18, %34 : f32
    %36 = arith.truncf %32 : vector<16x128xf32> to vector<16x128xbf16>
    %cst_19 = arith.constant dense<0.000000e+00> : vector<16x128xf32>
    %37 = tpu.matmul %36, %0, %cst_19 {dimension_numbers = #tpu.dot_dimension_numbers<[1], [0], [0], [1], [0, 0, 1, 1], [], []>} : vector<16x128xbf16>, vector<128x128xbf16>, vector<16x128xf32> -> vector<16x128xf32>
    %38 = arith.addf %37, %7 : vector<16x128xf32>
    %39 = vector.broadcast %35 : f32 to vector<16x128xf32>
    %40 = arith.addf %38, %39 : vector<16x128xf32>
    %41 = math.tanh %40 : vector<16x128xf32>
    %cst_20 = arith.constant 1.000000e-01 : f32
    %42 = vector.broadcast %cst_20 : f32 to vector<16x128xf32>
    %43 = arith.mulf %42, %41 : vector<16x128xf32>
    %44 = arith.addf %32, %43 : vector<16x128xf32>
    %c3_i32 = arith.constant 3 : i32
    %45 = arith.sitofp %c3_i32 : i32 to f32
    %cst_21 = arith.constant 1.000000e-01 : f32
    %46 = arith.mulf %cst_21, %45 : f32
    %cst_22 = arith.constant 0.000000e+00 : f32
    %47 = arith.addf %cst_22, %46 : f32
    %48 = arith.truncf %44 : vector<16x128xf32> to vector<16x128xbf16>
    %cst_23 = arith.constant dense<0.000000e+00> : vector<16x128xf32>
    %49 = tpu.matmul %48, %0, %cst_23 {dimension_numbers = #tpu.dot_dimension_numbers<[1], [0], [0], [1], [0, 0, 1, 1], [], []>} : vector<16x128xbf16>, vector<128x128xbf16>, vector<16x128xf32> -> vector<16x128xf32>
    %50 = arith.addf %49, %7 : vector<16x128xf32>
    %51 = vector.broadcast %47 : f32 to vector<16x128xf32>
    %52 = arith.addf %50, %51 : vector<16x128xf32>
    %53 = math.tanh %52 : vector<16x128xf32>
    %cst_24 = arith.constant 1.000000e-01 : f32
    %54 = vector.broadcast %cst_24 : f32 to vector<16x128xf32>
    %55 = arith.mulf %54, %53 : vector<16x128xf32>
    %56 = arith.addf %44, %55 : vector<16x128xf32>
    %c4_i32 = arith.constant 4 : i32
    %57 = arith.sitofp %c4_i32 : i32 to f32
    %cst_25 = arith.constant 1.000000e-01 : f32
    %58 = arith.mulf %cst_25, %57 : f32
    %cst_26 = arith.constant 0.000000e+00 : f32
    %59 = arith.addf %cst_26, %58 : f32
    %60 = arith.truncf %56 : vector<16x128xf32> to vector<16x128xbf16>
    %cst_27 = arith.constant dense<0.000000e+00> : vector<16x128xf32>
    %61 = tpu.matmul %60, %0, %cst_27 {dimension_numbers = #tpu.dot_dimension_numbers<[1], [0], [0], [1], [0, 0, 1, 1], [], []>} : vector<16x128xbf16>, vector<128x128xbf16>, vector<16x128xf32> -> vector<16x128xf32>
    %62 = arith.addf %61, %7 : vector<16x128xf32>
    %63 = vector.broadcast %59 : f32 to vector<16x128xf32>
    %64 = arith.addf %62, %63 : vector<16x128xf32>
    %65 = math.tanh %64 : vector<16x128xf32>
    %cst_28 = arith.constant 1.000000e-01 : f32
    %66 = vector.broadcast %cst_28 : f32 to vector<16x128xf32>
    %67 = arith.mulf %66, %65 : vector<16x128xf32>
    %68 = arith.addf %56, %67 : vector<16x128xf32>
    %c5_i32 = arith.constant 5 : i32
    %69 = arith.sitofp %c5_i32 : i32 to f32
    %cst_29 = arith.constant 1.000000e-01 : f32
    %70 = arith.mulf %cst_29, %69 : f32
    %cst_30 = arith.constant 0.000000e+00 : f32
    %71 = arith.addf %cst_30, %70 : f32
    %72 = arith.truncf %68 : vector<16x128xf32> to vector<16x128xbf16>
    %cst_31 = arith.constant dense<0.000000e+00> : vector<16x128xf32>
    %73 = tpu.matmul %72, %0, %cst_31 {dimension_numbers = #tpu.dot_dimension_numbers<[1], [0], [0], [1], [0, 0, 1, 1], [], []>} : vector<16x128xbf16>, vector<128x128xbf16>, vector<16x128xf32> -> vector<16x128xf32>
    %74 = arith.addf %73, %7 : vector<16x128xf32>
    %75 = vector.broadcast %71 : f32 to vector<16x128xf32>
    %76 = arith.addf %74, %75 : vector<16x128xf32>
    %77 = math.tanh %76 : vector<16x128xf32>
    %cst_32 = arith.constant 1.000000e-01 : f32
    %78 = vector.broadcast %cst_32 : f32 to vector<16x128xf32>
    %79 = arith.mulf %78, %77 : vector<16x128xf32>
    %80 = arith.addf %68, %79 : vector<16x128xf32>
    %c6_i32 = arith.constant 6 : i32
    %81 = arith.sitofp %c6_i32 : i32 to f32
    %cst_33 = arith.constant 1.000000e-01 : f32
    %82 = arith.mulf %cst_33, %81 : f32
    %cst_34 = arith.constant 0.000000e+00 : f32
    %83 = arith.addf %cst_34, %82 : f32
    %84 = arith.truncf %80 : vector<16x128xf32> to vector<16x128xbf16>
    %cst_35 = arith.constant dense<0.000000e+00> : vector<16x128xf32>
    %85 = tpu.matmul %84, %0, %cst_35 {dimension_numbers = #tpu.dot_dimension_numbers<[1], [0], [0], [1], [0, 0, 1, 1], [], []>} : vector<16x128xbf16>, vector<128x128xbf16>, vector<16x128xf32> -> vector<16x128xf32>
    %86 = arith.addf %85, %7 : vector<16x128xf32>
    %87 = vector.broadcast %83 : f32 to vector<16x128xf32>
    %88 = arith.addf %86, %87 : vector<16x128xf32>
    %89 = math.tanh %88 : vector<16x128xf32>
    %cst_36 = arith.constant 1.000000e-01 : f32
    %90 = vector.broadcast %cst_36 : f32 to vector<16x128xf32>
    %91 = arith.mulf %90, %89 : vector<16x128xf32>
    %92 = arith.addf %80, %91 : vector<16x128xf32>
    %c7_i32 = arith.constant 7 : i32
    %93 = arith.sitofp %c7_i32 : i32 to f32
    %cst_37 = arith.constant 1.000000e-01 : f32
    %94 = arith.mulf %cst_37, %93 : f32
    %cst_38 = arith.constant 0.000000e+00 : f32
    %95 = arith.addf %cst_38, %94 : f32
    %96 = arith.truncf %92 : vector<16x128xf32> to vector<16x128xbf16>
    %cst_39 = arith.constant dense<0.000000e+00> : vector<16x128xf32>
    %97 = tpu.matmul %96, %0, %cst_39 {dimension_numbers = #tpu.dot_dimension_numbers<[1], [0], [0], [1], [0, 0, 1, 1], [], []>} : vector<16x128xbf16>, vector<128x128xbf16>, vector<16x128xf32> -> vector<16x128xf32>
    %98 = arith.addf %97, %7 : vector<16x128xf32>
    %99 = vector.broadcast %95 : f32 to vector<16x128xf32>
    %100 = arith.addf %98, %99 : vector<16x128xf32>
    %101 = math.tanh %100 : vector<16x128xf32>
    %cst_40 = arith.constant 1.000000e-01 : f32
    %102 = vector.broadcast %cst_40 : f32 to vector<16x128xf32>
    %103 = arith.mulf %102, %101 : vector<16x128xf32>
    %104 = arith.addf %92, %103 : vector<16x128xf32>
    %c8_i32 = arith.constant 8 : i32
    %105 = arith.sitofp %c8_i32 : i32 to f32
    %cst_41 = arith.constant 1.000000e-01 : f32
    %106 = arith.mulf %cst_41, %105 : f32
    %cst_42 = arith.constant 0.000000e+00 : f32
    %107 = arith.addf %cst_42, %106 : f32
    %108 = arith.truncf %104 : vector<16x128xf32> to vector<16x128xbf16>
    %cst_43 = arith.constant dense<0.000000e+00> : vector<16x128xf32>
    %109 = tpu.matmul %108, %0, %cst_43 {dimension_numbers = #tpu.dot_dimension_numbers<[1], [0], [0], [1], [0, 0, 1, 1], [], []>} : vector<16x128xbf16>, vector<128x128xbf16>, vector<16x128xf32> -> vector<16x128xf32>
    %110 = arith.addf %109, %7 : vector<16x128xf32>
    %111 = vector.broadcast %107 : f32 to vector<16x128xf32>
    %112 = arith.addf %110, %111 : vector<16x128xf32>
    %113 = math.tanh %112 : vector<16x128xf32>
    %cst_44 = arith.constant 1.000000e-01 : f32
    %114 = vector.broadcast %cst_44 : f32 to vector<16x128xf32>
    %115 = arith.mulf %114, %113 : vector<16x128xf32>
    %116 = arith.addf %104, %115 : vector<16x128xf32>
    %c9_i32 = arith.constant 9 : i32
    %117 = arith.sitofp %c9_i32 : i32 to f32
    %cst_45 = arith.constant 1.000000e-01 : f32
    %118 = arith.mulf %cst_45, %117 : f32
    %cst_46 = arith.constant 0.000000e+00 : f32
    %119 = arith.addf %cst_46, %118 : f32
    %120 = arith.truncf %116 : vector<16x128xf32> to vector<16x128xbf16>
    %cst_47 = arith.constant dense<0.000000e+00> : vector<16x128xf32>
    %121 = tpu.matmul %120, %0, %cst_47 {dimension_numbers = #tpu.dot_dimension_numbers<[1], [0], [0], [1], [0, 0, 1, 1], [], []>} : vector<16x128xbf16>, vector<128x128xbf16>, vector<16x128xf32> -> vector<16x128xf32>
    %122 = arith.addf %121, %7 : vector<16x128xf32>
    %123 = vector.broadcast %119 : f32 to vector<16x128xf32>
    %124 = arith.addf %122, %123 : vector<16x128xf32>
    %125 = math.tanh %124 : vector<16x128xf32>
    %cst_48 = arith.constant 1.000000e-01 : f32
    %126 = vector.broadcast %cst_48 : f32 to vector<16x128xf32>
    %127 = arith.mulf %126, %125 : vector<16x128xf32>
    %128 = arith.addf %116, %127 : vector<16x128xf32>
    %c10_i32 = arith.constant 10 : i32
    %cst_49 = arith.constant 7.000000e+00 : f32
    %129 = vector.broadcast %cst_49 : f32 to vector<16x128xf32>
    %130 = arith.mulf %128, %129 : vector<16x128xf32>
    %cst_50 = arith.constant -5.000000e+00 : f32
    %131 = vector.broadcast %cst_50 : f32 to vector<16x128xf32>
    %132 = arith.addf %130, %131 : vector<16x128xf32>
    %c0_51 = arith.constant 0 : index
    %c0_52 = arith.constant 0 : index
    %133 = vector.load %arg6[%c0_51, %c0_52] : memref<16x128xf32, #tpu.memory_space<vmem>>, vector<16x128xf32>
    tpu.vector_store %arg6[%c0_51, %c0_52], %132 {strides = array<i32>} : memref<16x128xf32, #tpu.memory_space<vmem>>, vector<16x128xf32>,
    return
  }
  func.func @transform_0(%arg0: i32) -> (i32, i32) {
    %c0_i32 = arith.constant 0 : i32
    %c0_i32_0 = arith.constant 0 : i32
    return %arg0, %c0_i32 : i32, i32
  }
  func.func @transform_1(%arg0: i32) -> (i32, i32) {
    %c0_i32 = arith.constant 0 : i32
    %c0_i32_0 = arith.constant 0 : i32
    return %arg0, %c0_i32 : i32, i32
  }
  func.func @transform_2(%arg0: i32) -> (i32, i32) {
    %c0_i32 = arith.constant 0 : i32
    %c0_i32_0 = arith.constant 0 : i32
    %c0_i32_1 = arith.constant 0 : i32
    return %c0_i32, %c0_i32_0 : i32, i32
  }
  func.func @transform_3(%arg0: i32) -> (i32, i32) {
    %c0_i32 = arith.constant 0 : i32
    %c0_i32_0 = arith.constant 0 : i32
    %c0_i32_1 = arith.constant 0 : i32
    return %c0_i32, %c0_i32_0 : i32, i32
  }
  func.func @transform_4(%arg0: i32) -> (i32, i32) {
    %c0_i32 = arith.constant 0 : i32
    %c0_i32_0 = arith.constant 0 : i32
    %c0_i32_1 = arith.constant 0 : i32
    return %c0_i32, %c0_i32_0 : i32, i32
  }
  func.func @transform_5(%arg0: i32) -> (i32, i32) {
    %c0_i32 = arith.constant 0 : i32
    %c0_i32_0 = arith.constant 0 : i32
    return %arg0, %c0_i32 : i32, i32
  }
}

</mosaic_0001>

<llo_original>
// kernel: rectified_flow_forward.1
$region0: #{rectified_flow_forward.1}
  #allocation0 [shape = 'u32[]', space=smem, size = 0x4, offset = 0x4, fixed_abs, tag = 'smem constant byte address 0x4 - core index']
  #allocation1 [shape = 'u32[144,128]{1,0:T(1,128)}', space=vmem, size = 0x12000, scoped, tag = 'internal scratch']
  %s0 = inlined_call_operand.vmem [shape: f32[32,128], index: 0, kind: input, shape index: {}, may-alias: {0,5}]
  %s1 = inlined_call_operand.vmem [shape: f32[32,32], index: 1, kind: input, shape index: {}]
  %s2 = inlined_call_operand.vmem [shape: bf16[128,128], index: 2, kind: input, shape index: {}]
  %s3 = inlined_call_operand.vmem [shape: bf16[32,128], index: 3, kind: input, shape index: {}]
  %s4 = inlined_call_operand.vmem [shape: f32[1,128], index: 4, kind: input, shape index: {}]
  %s5 = inlined_call_operand.vmem [shape: f32[32,128], index: 5, kind: output, shape index: {}, may-alias: {0,5}]
  %s6 = sld [smem:[#allocation0]]
  $region53: #{rectified_flow_forward.1} parent=0
    _
  %s8 = ssub.s32 1, %s6
  %s9 = scalar_select 0, %s8, %s6
  loop: start=0, step=1, limit=4
  $region2: #{rectified_flow_forward.1} parent=0 // loop_pre_header
    _
  $region3: #{rectified_flow_forward.1} parent=0 // loop_header
    %s11 = sphi 0, %s15
    %p12 = scmp.ge.s32.totalorder %s11, 4
    %s21 = sphi 0, %s23
    %s24 = sphi 0, %s21
    %s25 = sphi 0, %s24
    %s41 = sphi 0, %s25
    %s47 = sphi 0, %s49
    %s50 = sphi 0, %s47
    %s51 = sphi 0, %s50
    %s67 = sphi 0, %s51
    %s71 = sphi 0, %s71
    %s73 = sphi 0, %s71
    %s74 = sphi 0, %s73
    %s88 = sphi 0, %s74
    %s92 = sphi 0, %s92
    %s94 = sphi 0, %s92
    %s95 = sphi 0, %s94
    %s109 = sphi 0, %s95
    %s113 = sphi 0, %s113
    %s115 = sphi 0, %s113
    %s116 = sphi 0, %s115
    %s130 = sphi 0, %s116
    %s136 = sphi 0, %s138
    %s139 = sphi 0, %s136
    %s140 = sphi 0, %s139
    %s156 = sphi 0, %s140
  $region4: #{rectified_flow_forward.1} parent=0 // loop_header_branch
    %14 = sbr.rel (%p12) target = $region8
  $region5: #{rectified_flow_forward.1} parent=0 // loop_body
    %s16 = ssub.s32 %s11, 1
    %s17 = ssub.s32 %s11, 2
    %s18 = sadd.s32 %s11, 1
    %s19 = ssub.s32 %s11, %s18
    %p20 = scmp.eq.s32.totalorder %s19, 0
    %s22 = sadd.s32 %s21, 1
    %s23 = scalar_select %p20, %s21, %s22
    %p26 = pneg %p20
    %p27 = scmp.eq.s32.totalorder %s11, 1
    %p28 = por %p26, %p27
    %p29 = scmp.ne.s32.totalorder %s21, %s24
    %p30 = scmp.eq.s32.totalorder %s11, 0
    %p31 = por %p29, %p30
    %p32 = scmp.ne.s32.totalorder %s21, %s24
    %p33 = scmp.eq.s32.totalorder %s16, 1
    %p34 = por %p32, %p33
    %p35 = scmp.ne.s32.totalorder %s24, %s25
    %p36 = scmp.eq.s32.totalorder %s16, 0
    %p37 = por %p35, %p36
    %p38 = scmp.ne.s32.totalorder %s24, %s25
    %p39 = scmp.eq.s32.totalorder %s17, 1
    %p40 = por %p38, %p39
    %p42 = scmp.ne.s32.totalorder %s25, %s41
    %p43 = scmp.eq.s32.totalorder %s17, 0
    %p44 = por %p42, %p43
    %s45 = ssub.s32 %s11, %s18
    %p46 = scmp.eq.s32.totalorder %s45, 0
    %s48 = sadd.s32 %s47, 1
    %s49 = scalar_select %p46, %s47, %s48
    %p52 = pneg %p46
    %p53 = scmp.eq.s32.totalorder %s11, 1
    %p54 = por %p52, %p53
    %p55 = scmp.ne.s32.totalorder %s47, %s50
    %p56 = scmp.eq.s32.totalorder %s11, 0
    %p57 = por %p55, %p56
    %p58 = scmp.ne.s32.totalorder %s47, %s50
    %p59 = scmp.eq.s32.totalorder %s16, 1
    %p60 = por %p58, %p59
    %p61 = scmp.ne.s32.totalorder %s50, %s51
    %p62 = scmp.eq.s32.totalorder %s16, 0
    %p63 = por %p61, %p62
    %p64 = scmp.ne.s32.totalorder %s50, %s51
    %p65 = scmp.eq.s32.totalorder %s17, 1
    %p66 = por %p64, %p65
    %p68 = scmp.ne.s32.totalorder %s51, %s67
    %p69 = scmp.eq.s32.totalorder %s17, 0
    %p70 = por %p68, %p69
    %s72 = sadd.s32 %s71, 1
    %p75 = scmp.eq.s32.totalorder %s11, 1
    %p76 = scmp.ne.s32.totalorder %s71, %s73
    %p77 = scmp.eq.s32.totalorder %s11, 0
    %p78 = por %p76, %p77
    %p79 = scmp.ne.s32.totalorder %s71, %s73
    %p80 = scmp.eq.s32.totalorder %s16, 1
    %p81 = por %p79, %p80
    %p82 = scmp.ne.s32.totalorder %s73, %s74
    %p83 = scmp.eq.s32.totalorder %s16, 0
    %p84 = por %p82, %p83
    %p85 = scmp.ne.s32.totalorder %s73, %s74
    %p86 = scmp.eq.s32.totalorder %s17, 1
    %p87 = por %p85, %p86
    %p89 = scmp.ne.s32.totalorder %s74, %s88
    %p90 = scmp.eq.s32.totalorder %s17, 0
    %p91 = por %p89, %p90
    %s93 = sadd.s32 %s92, 1
    %p96 = scmp.eq.s32.totalorder %s11, 1
    %p97 = scmp.ne.s32.totalorder %s92, %s94
    %p98 = scmp.eq.s32.totalorder %s11, 0
    %p99 = por %p97, %p98
    %p100 = scmp.ne.s32.totalorder %s92, %s94
    %p101 = scmp.eq.s32.totalorder %s16, 1
    %p102 = por %p100, %p101
    %p103 = scmp.ne.s32.totalorder %s94, %s95
    %p104 = scmp.eq.s32.totalorder %s16, 0
    %p105 = por %p103, %p104
    %p106 = scmp.ne.s32.totalorder %s94, %s95
    %p107 = scmp.eq.s32.totalorder %s17, 1
    %p108 = por %p106, %p107
    %p110 = scmp.ne.s32.totalorder %s95, %s109
    %p111 = scmp.eq.s32.totalorder %s17, 0
    %p112 = por %p110, %p111
    %s114 = sadd.s32 %s113, 1
    %p117 = scmp.eq.s32.totalorder %s11, 1
    %p118 = scmp.ne.s32.totalorder %s113, %s115
    %p119 = scmp.eq.s32.totalorder %s11, 0
    %p120 = por %p118, %p119
    %p121 = scmp.ne.s32.totalorder %s113, %s115
    %p122 = scmp.eq.s32.totalorder %s16, 1
    %p123 = por %p121, %p122
    %p124 = scmp.ne.s32.totalorder %s115, %s116
    %p125 = scmp.eq.s32.totalorder %s16, 0
    %p126 = por %p124, %p125
    %p127 = scmp.ne.s32.totalorder %s115, %s116
    %p128 = scmp.eq.s32.totalorder %s17, 1
    %p129 = por %p127, %p128
    %p131 = scmp.ne.s32.totalorder %s116, %s130
    %p132 = scmp.eq.s32.totalorder %s17, 0
    %p133 = por %p131, %p132
    %s134 = ssub.s32 %s11, %s18
    %p135 = scmp.eq.s32.totalorder %s134, 0
    %s137 = sadd.s32 %s136, 1
    %s138 = scalar_select %p135, %s136, %s137
    %p141 = pneg %p135
    %p142 = scmp.eq.s32.totalorder %s11, 1
    %p143 = por %p141, %p142
    %p144 = scmp.ne.s32.totalorder %s136, %s139
    %p145 = scmp.eq.s32.totalorder %s11, 0
    %p146 = por %p144, %p145
    %p147 = scmp.ne.s32.totalorder %s136, %s139
    %p148 = scmp.eq.s32.totalorder %s16, 1
    %p149 = por %p147, %p148
    %p150 = scmp.ne.s32.totalorder %s139, %s140
    %p151 = scmp.eq.s32.totalorder %s16, 0
    %p152 = por %p150, %p151
    %p153 = scmp.ne.s32.totalorder %s139, %s140
    %p154 = scmp.eq.s32.totalorder %s17, 1
    %p155 = por %p153, %p154
    %p157 = scmp.ne.s32.totalorder %s140, %s156
    %p158 = scmp.eq.s32.totalorder %s17, 0
    %p159 = por %p157, %p158
    %p160 = scmp.le.s32.totalorder 1, %s11
    %p161 = scmp.lt.s32.totalorder %s11, 3
    %p162 = pnand %p160, %p161
    %p163 = pneg %p162
    // Predicated region
    $region9: #{rectified_flow_forward.1} parent=5 // pred_check
      _
    $region10: #{rectified_flow_forward.1} parent=5 // pred_check_branch
      %165 = sbr.rel (%p162) target = $region12
    $region11: #{rectified_flow_forward.1} parent=5 // pred_region
      %s166 = ssub.s32 %s11, 1
      // Predicated region
      $region13: #{rectified_flow_forward.1} parent=11 // pred_check
        %p167 = pneg %p84
      $region14: #{rectified_flow_forward.1} parent=11 // pred_check_branch
        %169 = sbr.rel (%p167) target = $region16
      $region15: #{rectified_flow_forward.1} parent=11 // pred_region
        _
      $region16: #{rectified_flow_forward.1} parent=11 // pred_fallthru
        _
      // Predicated region
      $region17: #{rectified_flow_forward.1} parent=11 // pred_check
        %p170 = pneg %p105
      $region18: #{rectified_flow_forward.1} parent=11 // pred_check_branch
        %172 = sbr.rel (%p170) target = $region20
      $region19: #{rectified_flow_forward.1} parent=11 // pred_region
        _
      $region20: #{rectified_flow_forward.1} parent=11 // pred_fallthru
        _
      // Predicated region
      $region21: #{rectified_flow_forward.1} parent=11 // pred_check
        %p173 = pneg %p126
      $region22: #{rectified_flow_forward.1} parent=11 // pred_check_branch
        %175 = sbr.rel (%p173) target = $region24
      $region23: #{rectified_flow_forward.1} parent=11 // pred_region
        _
      $region24: #{rectified_flow_forward.1} parent=11 // pred_fallthru
        _
    $region12: #{rectified_flow_forward.1} parent=5 // pred_fallthru
      _
    %p176 = scmp.lt.s32.totalorder %s11, 2
    // Predicated region
    $region25: #{rectified_flow_forward.1} parent=5 // pred_check
      %p177 = pneg %p176
    $region26: #{rectified_flow_forward.1} parent=5 // pred_check_branch
      %179 = sbr.rel (%p177) target = $region28
    $region27: #{rectified_flow_forward.1} parent=5 // pred_region
      // Predicated region
      $region29: #{rectified_flow_forward.1} parent=27 // pred_check
        %p180 = pneg %p31
      $region30: #{rectified_flow_forward.1} parent=27 // pred_check_branch
        %182 = sbr.rel (%p180) target = $region32
      $region31: #{rectified_flow_forward.1} parent=27 // pred_region
        %s183 = smul.u32 2, %s11
        %p184 = scmp.lt.s32.totalorder %s183, 3
        %s185 = scalar_select %p184, %s183, 3
        %s186 = smul.addr %s185, 8
        %s187 = scalar_lea.vmem %s0, %s186
        %s188 = smul.u32 2, %s11
      $region32: #{rectified_flow_forward.1} parent=27 // pred_fallthru
        _
      // Predicated region
      $region33: #{rectified_flow_forward.1} parent=27 // pred_check
        %p189 = pneg %p57
      $region34: #{rectified_flow_forward.1} parent=27 // pred_check_branch
        %191 = sbr.rel (%p189) target = $region36
      $region35: #{rectified_flow_forward.1} parent=27 // pred_region
        %s192 = smul.u32 2, %s11
        %p193 = scmp.lt.s32.totalorder %s192, 3
        %s194 = scalar_select %p193, %s192, 3
        %s195 = smul.addr %s194, 8
        %s196 = scalar_lea.vmem %s1, %s195
        %s197 = smul.u32 2, %s11
      $region36: #{rectified_flow_forward.1} parent=27 // pred_fallthru
        _
    $region28: #{rectified_flow_forward.1} parent=5 // pred_fallthru
      _
    %p198 = scmp.le.s32.totalorder 1, %s11
    %p199 = scmp.lt.s32.totalorder %s11, 3
    %p200 = pnand %p198, %p199
    %p201 = pneg %p200
    // Predicated region
    $region37: #{rectified_flow_forward.1} parent=5 // pred_check
      _
    $region38: #{rectified_flow_forward.1} parent=5 // pred_check_branch
      %203 = sbr.rel (%p200) target = $region40
    $region39: #{rectified_flow_forward.1} parent=5 // pred_region
      %s204 = ssub.s32 %s11, 1
      %s205 = smul.u32 2, %s16
      %p206 = scmp.lt.s32.totalorder %s205, 3
      %s207 = scalar_select %p206, %s205, 3
      %s208 = smul.addr %s207, 8
      %s209 = scalar_lea.vmem %s0, %s208
      %p210 = pneg %p37
      %p211 = pneg %p34
      %s212 = smul.u32 2, %s16
      %p213 = scmp.lt.s32.totalorder %s212, 3
      %s214 = scalar_select %p213, %s212, 3
      %s215 = smul.addr %s214, 8
      %s216 = scalar_lea.vmem %s1, %s215
      %p217 = pneg %p63
      %p218 = pneg %p60
      %p219 = pneg %p84
      %p220 = pneg %p81
      %p221 = pneg %p105
      %p222 = pneg %p102
      %p223 = pneg %p126
      %p224 = pneg %p123
      %p225 = pneg %p152
      %p226 = pneg %p149
      %s227 = smul.u32 2, %s16
      %p228 = scmp.lt.s32.totalorder %s227, 3
      %s229 = scalar_select %p228, %s227, 3
      %s230 = smul.addr %s229, 8
      %s231 = scalar_lea.vmem %s5, %s230
      %s232 = smul.u32 2, %s16
      %p233 = scmp.lt.s32.totalorder %s232, 3
      %s234 = scalar_select %p233, %s232, 3
      %s235 = smul.addr %s234, 8
      %s236 = scalar_lea.vmem %s0, %s235
      %s237 = smul.u32 2, %s16
      %s238 = smul.u32 2, %s16
      %p239 = scmp.lt.s32.totalorder %s238, 3
      %s240 = scalar_select %p239, %s238, 3
      %s241 = smul.addr %s240, 8
      %s242 = scalar_lea.vmem %s1, %s241
      %s243 = smul.u32 2, %s16
      %s244 = smul.u32 2, %s16
      %p245 = scmp.lt.s32.totalorder %s244, 3
      %s246 = scalar_select %p245, %s244, 3
      %s247 = smul.addr %s246, 8
      %s248 = scalar_lea.vmem %s5, %s247
      %s249 = smul.u32 2, %s16
      %v251 = vld [vmem:[%s2] sm:$0xf]
      %v252 = vld [vmem:[%s2 + $0x4] sm:$0xf]
      %v253 = vld [vmem:[%s2 + $0x8] sm:$0xf]
      %v254 = vld [vmem:[%s2 + $0xc] sm:$0xf]
      %v255 = vld [vmem:[%s2 + $0x10] sm:$0xf]
      %v256 = vld [vmem:[%s2 + $0x14] sm:$0xf]
      %v257 = vld [vmem:[%s2 + $0x18] sm:$0xf]
      %v258 = vld [vmem:[%s2 + $0x1c] sm:$0xf]
      %v259 = vld [vmem:[%s2 + $0x20] sm:$0xf]
      %v260 = vld [vmem:[%s2 + $0x24] sm:$0xf]
      %v261 = vld [vmem:[%s2 + $0x28] sm:$0xf]
      %v262 = vld [vmem:[%s2 + $0x2c] sm:$0xf]
      %v263 = vld [vmem:[%s2 + $0x30] sm:$0xf]
      %v264 = vld [vmem:[%s2 + $0x34] sm:$0xf]
      %v265 = vld [vmem:[%s2 + $0x38] sm:$0xf]
      %v266 = vld [vmem:[%s2 + $0x3c] sm:$0xf]
      %v267 = vld [vmem:[%s242] sm:$0xff]
      %v268 = vld [vmem:[%s242 + $0x8] sm:$0xff]
      %v269 = vpack.c.bf16 %v268, %v267
      %v270 = vld [vmem:[%s3] sm:$0xf]
      %v271 = vld [vmem:[%s3 + $0x4] sm:$0xf]
      %v272 = vld [vmem:[%s3 + $0x8] sm:$0xf]
      %v273 = vld [vmem:[%s3 + $0xc] sm:$0xf]
      %v274 = vld [vmem:[%s4] sm:$0x1]
      %v276 = vlaneseq
      %v277 = vshrl.u32 %v276, 7
      %v278 = vsub.s32 0, %v277
      %v279 = vrot.slane %v274, %v278
      %v285 = vunpack.c.l.b16 %v270
      %v286 = vunpack.c.l.b16 %v271
      %v287 = vunpack.c.l.b16 %v272
      %v288 = vunpack.c.l.b16 %v273
      %v289 = vpack.c.b16 %v286, %v285
      %v290 = vpack.c.b16 %v288, %v287
      %vm293 = vcmask 261120
      %v295 = vsel %vm293, %v269, 0
      %297 = vmatprep.subr.bf16.mxu0 0
      %298 = vmatpush1.bf16.msra.mxu0 0
      %299 = vmatprep.subr.bf16.mxu0 0
      %300 = vmatpush1.bf16.msra.mxu0 0
      %301 = vmatprep.subr.bf16.mxu0 0
      %302 = vmatpush1.bf16.msra.mxu0 0
      %303 = vmatprep.subr.bf16.mxu0 0
      %304 = vmatpush1.bf16.msra.mxu0 0
      %305 = vmatprep.subr.bf16.mxu0 0
      %306 = vmatpush1.bf16.msra.mxu0 0
      %307 = vmatprep.subr.bf16.mxu0 0
      %308 = vmatpush1.bf16.msra.mxu0 0
      %309 = vmatprep.subr.bf16.mxu0 0
      %310 = vmatpush1.bf16.msra.mxu0 %v290
      %311 = vmatprep.subr.bf16.mxu0 0
      %312 = vmatpush1.bf16.msra.mxu0 %v289
      %313 = vmatprep.subr.bf16.mxu0 0
      %314 = vmatpush2.bf16.msra.mxu0 0
      %315 = vmatprep.subr.bf16.mxu0 0
      %316 = vmatpush2.bf16.msra.mxu0 0
      %317 = vmatprep.subr.bf16.mxu0 0
      %318 = vmatpush2.bf16.msra.mxu0 0
      %319 = vmatprep.subr.bf16.mxu0 0
      %320 = vmatpush2.bf16.msra.mxu0 0
      %321 = vmatprep.subr.bf16.mxu0 0
      %322 = vmatpush2.bf16.msra.mxu0 0
      %323 = vmatprep.subr.bf16.mxu0 0
      %324 = vmatpush2.bf16.msra.mxu0 0
      %325 = vmatprep.subr.bf16.mxu0 0
      %326 = vmatpush2.bf16.msra.mxu0 0
      %327 = vmatprep.subr.bf16.mxu0 0
      %328 = vmatpush2.bf16.msra.mxu0 0
      %329 = vmatprep.mubr.bf16.mxu0 0
      %330 = vmatmul.mubr.bf16.gmra.mxu0 %v295
      %v331 = vpop.f32.mrf.mxu0
      %v332 = vadd.f32 %v279, %v331
      %v333 = vpop.f32.mrf.mxu0
      %v334 = vpop.f32.mrf.mxu0
      %v335 = vadd.f32 %v279, %v334
      %v336 = vpop.f32.mrf.mxu0
      %337 = vdwg.mxu0
      %v338 = vld [vmem:[%s236] sm:$0xff]
      %v339 = vld [vmem:[%s236 + $0x8] sm:$0xff]
      %v340 = vpack.c.bf16 %v339, %v338
      %v357 = vunpack.c.l.b16 %v251
      %v358 = vunpack.c.l.b16 %v252
      %v359 = vunpack.c.l.b16 %v253
      %v360 = vunpack.c.l.b16 %v254
      %v361 = vunpack.c.l.b16 %v255
      %v362 = vunpack.c.l.b16 %v256
      %v363 = vunpack.c.l.b16 %v257
      %v364 = vunpack.c.l.b16 %v258
      %v365 = vunpack.c.l.b16 %v259
      %v366 = vunpack.c.l.b16 %v260
      %v367 = vunpack.c.l.b16 %v261
      %v368 = vunpack.c.l.b16 %v262
      %v369 = vunpack.c.l.b16 %v263
      %v370 = vunpack.c.l.b16 %v264
      %v371 = vunpack.c.l.b16 %v265
      %v372 = vunpack.c.l.b16 %v266
      %v373 = vpack.c.b16 %v358, %v357
      %v374 = vpack.c.b16 %v360, %v359
      %v375 = vpack.c.b16 %v362, %v361
      %v376 = vpack.c.b16 %v364, %v363
      %v377 = vpack.c.b16 %v366, %v365
      %v378 = vpack.c.b16 %v368, %v367
      %v379 = vpack.c.b16 %v370, %v369
      %v380 = vpack.c.b16 %v372, %v371
      %389 = vmatprep.subr.bf16.mxu0 0
      %390 = vmatpush1.bf16.msra.mxu0 %v380
      %391 = vmatprep.subr.bf16.mxu0 0
      %392 = vmatpush1.bf16.msra.mxu0 %v379
      %393 = vmatprep.subr.bf16.mxu0 0
      %394 = vmatpush1.bf16.msra.mxu0 %v378
      %395 = vmatprep.subr.bf16.mxu0 0
      %396 = vmatpush1.bf16.msra.mxu0 %v377
      %397 = vmatprep.subr.bf16.mxu0 0
      %398 = vmatpush1.bf16.msra.mxu0 %v376
      %399 = vmatprep.subr.bf16.mxu0 0
      %400 = vmatpush1.bf16.msra.mxu0 %v375
      %401 = vmatprep.subr.bf16.mxu0 0
      %402 = vmatpush1.bf16.msra.mxu0 %v374
      %403 = vmatprep.subr.bf16.mxu0 0
      %404 = vmatpush1.bf16.msra.mxu0 %v373
      %405 = vmatprep.subr.bf16.mxu0 0
      %406 = vmatpush2.bf16.msra.mxu0 0
      %407 = vmatprep.subr.bf16.mxu0 0
      %408 = vmatpush2.bf16.msra.mxu0 0
      %409 = vmatprep.subr.bf16.mxu0 0
      %410 = vmatpush2.bf16.msra.mxu0 0
      %411 = vmatprep.subr.bf16.mxu0 0
      %412 = vmatpush2.bf16.msra.mxu0 0
      %413 = vmatprep.subr.bf16.mxu0 0
      %414 = vmatpush2.bf16.msra.mxu0 0
      %415 = vmatprep.subr.bf16.mxu0 0
      %416 = vmatpush2.bf16.msra.mxu0 0
      %417 = vmatprep.subr.bf16.mxu0 0
      %418 = vmatpush2.bf16.msra.mxu0 0
      %419 = vmatprep.subr.bf16.mxu0 0
      %420 = vmatpush2.bf16.msra.mxu0 0
      %421 = vmatprep.mubr.bf16.mxu0 0
      %422 = vmatmul.mubr.bf16.gmra.mxu0 %v340
      %v423 = vpop.f32.mrf.mxu0
      %v424 = vadd.f32 %v332, %v423
      %v425 = vpop.f32.mrf.mxu0
      %v426 = vpop.f32.mrf.mxu0
      %v427 = vadd.f32 %v335, %v426
      %v428 = vpop.f32.mrf.mxu0
      %429 = vdwg.mxu0
      %v430 = vadd.f32 %v424, 0.0
      %v431 = vadd.f32 %v427, 0.0
      %v432 = vtanh.pop %v430
      %v433 = vtanh.pop %v431
      %v434 = vmul.f32 %v432, 0.1
      %v435 = vmul.f32 %v433, 0.1
      %v436 = vadd.f32 %v338, %v434
      %v437 = vadd.f32 %v339, %v435
      %v438 = vpack.c.bf16 %v437, %v436
      %439 = vmatprep.subr.bf16.mxu0 0
      %440 = vmatpush1.bf16.msra.mxu0 %v380
      %441 = vmatprep.subr.bf16.mxu0 0
      %442 = vmatpush1.bf16.msra.mxu0 %v379
      %443 = vmatprep.subr.bf16.mxu0 0
      %444 = vmatpush1.bf16.msra.mxu0 %v378
      %445 = vmatprep.subr.bf16.mxu0 0
      %446 = vmatpush1.bf16.msra.mxu0 %v377
      %447 = vmatprep.subr.bf16.mxu0 0
      %448 = vmatpush1.bf16.msra.mxu0 %v376
      %449 = vmatprep.subr.bf16.mxu0 0
      %450 = vmatpush1.bf16.msra.mxu0 %v375
      %451 = vmatprep.subr.bf16.mxu0 0
      %452 = vmatpush1.bf16.msra.mxu0 %v374
      %453 = vmatprep.subr.bf16.mxu0 0
      %454 = vmatpush1.bf16.msra.mxu0 %v373
      %455 = vmatprep.subr.bf16.mxu0 0
      %456 = vmatpush2.bf16.msra.mxu0 0
      %457 = vmatprep.subr.bf16.mxu0 0
      %458 = vmatpush2.bf16.msra.mxu0 0
      %459 = vmatprep.subr.bf16.mxu0 0
      %460 = vmatpush2.bf16.msra.mxu0 0
      %461 = vmatprep.subr.bf16.mxu0 0
      %462 = vmatpush2.bf16.msra.mxu0 0
      %463 = vmatprep.subr.bf16.mxu0 0
      %464 = vmatpush2.bf16.msra.mxu0 0
      %465 = vmatprep.subr.bf16.mxu0 0
      %466 = vmatpush2.bf16.msra.mxu0 0
      %467 = vmatprep.subr.bf16.mxu0 0
      %468 = vmatpush2.bf16.msra.mxu0 0
      %469 = vmatprep.subr.bf16.mxu0 0
      %470 = vmatpush2.bf16.msra.mxu0 0
      %471 = vmatprep.mubr.bf16.mxu0 0
      %472 = vmatmul.mubr.bf16.gmra.mxu0 %v438
      %v473 = vpop.f32.mrf.mxu0
      %v474 = vadd.f32 %v332, %v473
      %v475 = vpop.f32.mrf.mxu0
      %v476 = vpop.f32.mrf.mxu0
      %v477 = vadd.f32 %v335, %v476
      %v478 = vpop.f32.mrf.mxu0
      %479 = vdwg.mxu0
      %v480 = vadd.f32 %v474, 0.1
      %v481 = vadd.f32 %v477, 0.1
      %v482 = vtanh.pop %v480
      %v483 = vtanh.pop %v481
      %v484 = vmul.f32 %v482, 0.1
      %v485 = vmul.f32 %v483, 0.1
      %v486 = vadd.f32 %v436, %v484
      %v487 = vadd.f32 %v437, %v485
      %v488 = vpack.c.bf16 %v487, %v486
      %489 = vmatprep.subr.bf16.mxu0 0
      %490 = vmatpush1.bf16.msra.mxu0 %v380
      %491 = vmatprep.subr.bf16.mxu0 0
      %492 = vmatpush1.bf16.msra.mxu0 %v379
      %493 = vmatprep.subr.bf16.mxu0 0
      %494 = vmatpush1.bf16.msra.mxu0 %v378
      %495 = vmatprep.subr.bf16.mxu0 0
      %496 = vmatpush1.bf16.msra.mxu0 %v377
      %497 = vmatprep.subr.bf16.mxu0 0
      %498 = vmatpush1.bf16.msra.mxu0 %v376
      %499 = vmatprep.subr.bf16.mxu0 0
      %500 = vmatpush1.bf16.msra.mxu0 %v375
      %501 = vmatprep.subr.bf16.mxu0 0
      %502 = vmatpush1.bf16.msra.mxu0 %v374
      %503 = vmatprep.subr.bf16.mxu0 0
      %504 = vmatpush1.bf16.msra.mxu0 %v373
      %505 = vmatprep.subr.bf16.mxu0 0
      %506 = vmatpush2.bf16.msra.mxu0 0
      %507 = vmatprep.subr.bf16.mxu0 0
      %508 = vmatpush2.bf16.msra.mxu0 0
      %509 = vmatprep.subr.bf16.mxu0 0
      %510 = vmatpush2.bf16.msra.mxu0 0
      %511 = vmatprep.subr.bf16.mxu0 0
      %512 = vmatpush2.bf16.msra.mxu0 0
      %513 = vmatprep.subr.bf16.mxu0 0
      %514 = vmatpush2.bf16.msra.mxu0 0
      %515 = vmatprep.subr.bf16.mxu0 0
      %516 = vmatpush2.bf16.msra.mxu0 0
      %517 = vmatprep.subr.bf16.mxu0 0
      %518 = vmatpush2.bf16.msra.mxu0 0
      %519 = vmatprep.subr.bf16.mxu0 0
      %520 = vmatpush2.bf16.msra.mxu0 0
      %521 = vmatprep.mubr.bf16.mxu0 0
      %522 = vmatmul.mubr.bf16.gmra.mxu0 %v488
      %v523 = vpop.f32.mrf.mxu0
      %v524 = vadd.f32 %v332, %v523
      %v525 = vpop.f32.mrf.mxu0
      %v526 = vpop.f32.mrf.mxu0
      %v527 = vadd.f32 %v335, %v526
      %v528 = vpop.f32.mrf.mxu0
      %529 = vdwg.mxu0
      %v530 = vadd.f32 %v524, 0.2
      %v531 = vadd.f32 %v527, 0.2
      %v532 = vtanh.pop %v530
      %v533 = vtanh.pop %v531
      %v534 = vmul.f32 %v532, 0.1
      %v535 = vmul.f32 %v533, 0.1
      %v536 = vadd.f32 %v486, %v534
      %v537 = vadd.f32 %v487, %v535
      %v538 = vpack.c.bf16 %v537, %v536
      %539 = vmatprep.subr.bf16.mxu0 0
      %540 = vmatpush1.bf16.msra.mxu0 %v380
      %541 = vmatprep.subr.bf16.mxu0 0
      %542 = vmatpush1.bf16.msra.mxu0 %v379
      %543 = vmatprep.subr.bf16.mxu0 0
      %544 = vmatpush1.bf16.msra.mxu0 %v378
      %545 = vmatprep.subr.bf16.mxu0 0
      %546 = vmatpush1.bf16.msra.mxu0 %v377
      %547 = vmatprep.subr.bf16.mxu0 0
      %548 = vmatpush1.bf16.msra.mxu0 %v376
      %549 = vmatprep.subr.bf16.mxu0 0
      %550 = vmatpush1.bf16.msra.mxu0 %v375
      %551 = vmatprep.subr.bf16.mxu0 0
      %552 = vmatpush1.bf16.msra.mxu0 %v374
      %553 = vmatprep.subr.bf16.mxu0 0
      %554 = vmatpush1.bf16.msra.mxu0 %v373
      %555 = vmatprep.subr.bf16.mxu0 0
      %556 = vmatpush2.bf16.msra.mxu0 0
      %557 = vmatprep.subr.bf16.mxu0 0
      %558 = vmatpush2.bf16.msra.mxu0 0
      %559 = vmatprep.subr.bf16.mxu0 0
      %560 = vmatpush2.bf16.msra.mxu0 0
      %561 = vmatprep.subr.bf16.mxu0 0
      %562 = vmatpush2.bf16.msra.mxu0 0
      %563 = vmatprep.subr.bf16.mxu0 0
      %564 = vmatpush2.bf16.msra.mxu0 0
      %565 = vmatprep.subr.bf16.mxu0 0
      %566 = vmatpush2.bf16.msra.mxu0 0
      %567 = vmatprep.subr.bf16.mxu0 0
      %568 = vmatpush2.bf16.msra.mxu0 0
      %569 = vmatprep.subr.bf16.mxu0 0
      %570 = vmatpush2.bf16.msra.mxu0 0
      %571 = vmatprep.mubr.bf16.mxu0 0
      %572 = vmatmul.mubr.bf16.gmra.mxu0 %v538
      %v573 = vpop.f32.mrf.mxu0
      %v574 = vadd.f32 %v332, %v573
      %v575 = vpop.f32.mrf.mxu0
      %v576 = vpop.f32.mrf.mxu0
      %v577 = vadd.f32 %v335, %v576
      %v578 = vpop.f32.mrf.mxu0
      %579 = vdwg.mxu0
      %v580 = vadd.f32 %v574, 0.3
      %v581 = vadd.f32 %v577, 0.3
      %v582 = vtanh.pop %v580
      %v583 = vtanh.pop %v581
      %v584 = vmul.f32 %v582, 0.1
      %v585 = vmul.f32 %v583, 0.1
      %v586 = vadd.f32 %v536, %v584
      %v587 = vadd.f32 %v537, %v585
      %v588 = vpack.c.bf16 %v587, %v586
      %589 = vmatprep.subr.bf16.mxu0 0
      %590 = vmatpush1.bf16.msra.mxu0 %v380
      %591 = vmatprep.subr.bf16.mxu0 0
      %592 = vmatpush1.bf16.msra.mxu0 %v379
      %593 = vmatprep.subr.bf16.mxu0 0
      %594 = vmatpush1.bf16.msra.mxu0 %v378
      %595 = vmatprep.subr.bf16.mxu0 0
      %596 = vmatpush1.bf16.msra.mxu0 %v377
      %597 = vmatprep.subr.bf16.mxu0 0
      %598 = vmatpush1.bf16.msra.mxu0 %v376
      %599 = vmatprep.subr.bf16.mxu0 0
      %600 = vmatpush1.bf16.msra.mxu0 %v375
      %601 = vmatprep.subr.bf16.mxu0 0
      %602 = vmatpush1.bf16.msra.mxu0 %v374
      %603 = vmatprep.subr.bf16.mxu0 0
      %604 = vmatpush1.bf16.msra.mxu0 %v373
      %605 = vmatprep.subr.bf16.mxu0 0
      %606 = vmatpush2.bf16.msra.mxu0 0
      %607 = vmatprep.subr.bf16.mxu0 0
      %608 = vmatpush2.bf16.msra.mxu0 0
      %609 = vmatprep.subr.bf16.mxu0 0
      %610 = vmatpush2.bf16.msra.mxu0 0
      %611 = vmatprep.subr.bf16.mxu0 0
      %612 = vmatpush2.bf16.msra.mxu0 0
      %613 = vmatprep.subr.bf16.mxu0 0
      %614 = vmatpush2.bf16.msra.mxu0 0
      %615 = vmatprep.subr.bf16.mxu0 0
      %616 = vmatpush2.bf16.msra.mxu0 0
      %617 = vmatprep.subr.bf16.mxu0 0
      %618 = vmatpush2.bf16.msra.mxu0 0
      %619 = vmatprep.subr.bf16.mxu0 0
      %620 = vmatpush2.bf16.msra.mxu0 0
      %621 = vmatprep.mubr.bf16.mxu0 0
      %622 = vmatmul.mubr.bf16.gmra.mxu0 %v588
      %v623 = vpop.f32.mrf.mxu0
      %v624 = vadd.f32 %v332, %v623
      %v625 = vpop.f32.mrf.mxu0
      %v626 = vpop.f32.mrf.mxu0
      %v627 = vadd.f32 %v335, %v626
      %v628 = vpop.f32.mrf.mxu0
      %629 = vdwg.mxu0
      %v630 = vadd.f32 %v624, 0.4
      %v631 = vadd.f32 %v627, 0.4
      %v632 = vtanh.pop %v630
      %v633 = vtanh.pop %v631
      %v634 = vmul.f32 %v632, 0.1
      %v635 = vmul.f32 %v633, 0.1
      %v636 = vadd.f32 %v586, %v634
      %v637 = vadd.f32 %v587, %v635
      %v638 = vpack.c.bf16 %v637, %v636
      %639 = vmatprep.subr.bf16.mxu0 0
      %640 = vmatpush1.bf16.msra.mxu0 %v380
      %641 = vmatprep.subr.bf16.mxu0 0
      %642 = vmatpush1.bf16.msra.mxu0 %v379
      %643 = vmatprep.subr.bf16.mxu0 0
      %644 = vmatpush1.bf16.msra.mxu0 %v378
      %645 = vmatprep.subr.bf16.mxu0 0
      %646 = vmatpush1.bf16.msra.mxu0 %v377
      %647 = vmatprep.subr.bf16.mxu0 0
      %648 = vmatpush1.bf16.msra.mxu0 %v376
      %649 = vmatprep.subr.bf16.mxu0 0
      %650 = vmatpush1.bf16.msra.mxu0 %v375
      %651 = vmatprep.subr.bf16.mxu0 0
      %652 = vmatpush1.bf16.msra.mxu0 %v374
      %653 = vmatprep.subr.bf16.mxu0 0
      %654 = vmatpush1.bf16.msra.mxu0 %v373
      %655 = vmatprep.subr.bf16.mxu0 0
      %656 = vmatpush2.bf16.msra.mxu0 0
      %657 = vmatprep.subr.bf16.mxu0 0
      %658 = vmatpush2.bf16.msra.mxu0 0
      %659 = vmatprep.subr.bf16.mxu0 0
      %660 = vmatpush2.bf16.msra.mxu0 0
      %661 = vmatprep.subr.bf16.mxu0 0
      %662 = vmatpush2.bf16.msra.mxu0 0
      %663 = vmatprep.subr.bf16.mxu0 0
      %664 = vmatpush2.bf16.msra.mxu0 0
      %665 = vmatprep.subr.bf16.mxu0 0
      %666 = vmatpush2.bf16.msra.mxu0 0
      %667 = vmatprep.subr.bf16.mxu0 0
      %668 = vmatpush2.bf16.msra.mxu0 0
      %669 = vmatprep.subr.bf16.mxu0 0
      %670 = vmatpush2.bf16.msra.mxu0 0
      %671 = vmatprep.mubr.bf16.mxu0 0
      %672 = vmatmul.mubr.bf16.gmra.mxu0 %v638
      %v673 = vpop.f32.mrf.mxu0
      %v674 = vadd.f32 %v332, %v673
      %v675 = vpop.f32.mrf.mxu0
      %v676 = vpop.f32.mrf.mxu0
      %v677 = vadd.f32 %v335, %v676
      %v678 = vpop.f32.mrf.mxu0
      %679 = vdwg.mxu0
      %v680 = vadd.f32 %v674, 0.5
      %v681 = vadd.f32 %v677, 0.5
      %v682 = vtanh.pop %v680
      %v683 = vtanh.pop %v681
      %v684 = vmul.f32 %v682, 0.1
      %v685 = vmul.f32 %v683, 0.1
      %v686 = vadd.f32 %v636, %v684
      %v687 = vadd.f32 %v637, %v685
      %v688 = vpack.c.bf16 %v687, %v686
      %689 = vmatprep.subr.bf16.mxu0 0
      %690 = vmatpush1.bf16.msra.mxu0 %v380
      %691 = vmatprep.subr.bf16.mxu0 0
      %692 = vmatpush1.bf16.msra.mxu0 %v379
      %693 = vmatprep.subr.bf16.mxu0 0
      %694 = vmatpush1.bf16.msra.mxu0 %v378
      %695 = vmatprep.subr.bf16.mxu0 0
      %696 = vmatpush1.bf16.msra.mxu0 %v377
      %697 = vmatprep.subr.bf16.mxu0 0
      %698 = vmatpush1.bf16.msra.mxu0 %v376
      %699 = vmatprep.subr.bf16.mxu0 0
      %700 = vmatpush1.bf16.msra.mxu0 %v375
      %701 = vmatprep.subr.bf16.mxu0 0
      %702 = vmatpush1.bf16.msra.mxu0 %v374
      %703 = vmatprep.subr.bf16.mxu0 0
      %704 = vmatpush1.bf16.msra.mxu0 %v373
      %705 = vmatprep.subr.bf16.mxu0 0
      %706 = vmatpush2.bf16.msra.mxu0 0
      %707 = vmatprep.subr.bf16.mxu0 0
      %708 = vmatpush2.bf16.msra.mxu0 0
      %709 = vmatprep.subr.bf16.mxu0 0
      %710 = vmatpush2.bf16.msra.mxu0 0
      %711 = vmatprep.subr.bf16.mxu0 0
      %712 = vmatpush2.bf16.msra.mxu0 0
      %713 = vmatprep.subr.bf16.mxu0 0
      %714 = vmatpush2.bf16.msra.mxu0 0
      %715 = vmatprep.subr.bf16.mxu0 0
      %716 = vmatpush2.bf16.msra.mxu0 0
      %717 = vmatprep.subr.bf16.mxu0 0
      %718 = vmatpush2.bf16.msra.mxu0 0
      %719 = vmatprep.subr.bf16.mxu0 0
      %720 = vmatpush2.bf16.msra.mxu0 0
      %721 = vmatprep.mubr.bf16.mxu0 0
      %722 = vmatmul.mubr.bf16.gmra.mxu0 %v688
      %v723 = vpop.f32.mrf.mxu0
      %v724 = vadd.f32 %v332, %v723
      %v725 = vpop.f32.mrf.mxu0
      %v726 = vpop.f32.mrf.mxu0
      %v727 = vadd.f32 %v335, %v726
      %v728 = vpop.f32.mrf.mxu0
      %729 = vdwg.mxu0
      %v730 = vadd.f32 %v724, 0.6
      %v731 = vadd.f32 %v727, 0.6
      %v732 = vtanh.pop %v730
      %v733 = vtanh.pop %v731
      %v734 = vmul.f32 %v732, 0.1
      %v735 = vmul.f32 %v733, 0.1
      %v736 = vadd.f32 %v686, %v734
      %v737 = vadd.f32 %v687, %v735
      %v738 = vpack.c.bf16 %v737, %v736
      %739 = vmatprep.subr.bf16.mxu0 0
      %740 = vmatpush1.bf16.msra.mxu0 %v380
      %741 = vmatprep.subr.bf16.mxu0 0
      %742 = vmatpush1.bf16.msra.mxu0 %v379
      %743 = vmatprep.subr.bf16.mxu0 0
      %744 = vmatpush1.bf16.msra.mxu0 %v378
      %745 = vmatprep.subr.bf16.mxu0 0
      %746 = vmatpush1.bf16.msra.mxu0 %v377
      %747 = vmatprep.subr.bf16.mxu0 0
      %748 = vmatpush1.bf16.msra.mxu0 %v376
      %749 = vmatprep.subr.bf16.mxu0 0
      %750 = vmatpush1.bf16.msra.mxu0 %v375
      %751 = vmatprep.subr.bf16.mxu0 0
      %752 = vmatpush1.bf16.msra.mxu0 %v374
      %753 = vmatprep.subr.bf16.mxu0 0
      %754 = vmatpush1.bf16.msra.mxu0 %v373
      %755 = vmatprep.subr.bf16.mxu0 0
      %756 = vmatpush2.bf16.msra.mxu0 0
      %757 = vmatprep.subr.bf16.mxu0 0
      %758 = vmatpush2.bf16.msra.mxu0 0
      %759 = vmatprep.subr.bf16.mxu0 0
      %760 = vmatpush2.bf16.msra.mxu0 0
      %761 = vmatprep.subr.bf16.mxu0 0
      %762 = vmatpush2.bf16.msra.mxu0 0
      %763 = vmatprep.subr.bf16.mxu0 0
      %764 = vmatpush2.bf16.msra.mxu0 0
      %765 = vmatprep.subr.bf16.mxu0 0
      %766 = vmatpush2.bf16.msra.mxu0 0
      %767 = vmatprep.subr.bf16.mxu0 0
      %768 = vmatpush2.bf16.msra.mxu0 0
      %769 = vmatprep.subr.bf16.mxu0 0
      %770 = vmatpush2.bf16.msra.mxu0 0
      %771 = vmatprep.mubr.bf16.mxu0 0
      %772 = vmatmul.mubr.bf16.gmra.mxu0 %v738
      %v773 = vpop.f32.mrf.mxu0
      %v774 = vadd.f32 %v332, %v773
      %v775 = vpop.f32.mrf.mxu0
      %v776 = vpop.f32.mrf.mxu0
      %v777 = vadd.f32 %v335, %v776
      %v778 = vpop.f32.mrf.mxu0
      %779 = vdwg.mxu0
      %v780 = vadd.f32 %v774, 0.7
      %v781 = vadd.f32 %v777, 0.7
      %v782 = vtanh.pop %v780
      %v783 = vtanh.pop %v781
      %v784 = vmul.f32 %v782, 0.1
      %v785 = vmul.f32 %v783, 0.1
      %v786 = vadd.f32 %v736, %v784
      %v787 = vadd.f32 %v737, %v785
      %v788 = vpack.c.bf16 %v787, %v786
      %789 = vmatprep.subr.bf16.mxu0 0
      %790 = vmatpush1.bf16.msra.mxu0 %v380
      %791 = vmatprep.subr.bf16.mxu0 0
      %792 = vmatpush1.bf16.msra.mxu0 %v379
      %793 = vmatprep.subr.bf16.mxu0 0
      %794 = vmatpush1.bf16.msra.mxu0 %v378
      %795 = vmatprep.subr.bf16.mxu0 0
      %796 = vmatpush1.bf16.msra.mxu0 %v377
      %797 = vmatprep.subr.bf16.mxu0 0
      %798 = vmatpush1.bf16.msra.mxu0 %v376
      %799 = vmatprep.subr.bf16.mxu0 0
      %800 = vmatpush1.bf16.msra.mxu0 %v375
      %801 = vmatprep.subr.bf16.mxu0 0
      %802 = vmatpush1.bf16.msra.mxu0 %v374
      %803 = vmatprep.subr.bf16.mxu0 0
      %804 = vmatpush1.bf16.msra.mxu0 %v373
      %805 = vmatprep.subr.bf16.mxu0 0
      %806 = vmatpush2.bf16.msra.mxu0 0
      %807 = vmatprep.subr.bf16.mxu0 0
      %808 = vmatpush2.bf16.msra.mxu0 0
      %809 = vmatprep.subr.bf16.mxu0 0
      %810 = vmatpush2.bf16.msra.mxu0 0
      %811 = vmatprep.subr.bf16.mxu0 0
      %812 = vmatpush2.bf16.msra.mxu0 0
      %813 = vmatprep.subr.bf16.mxu0 0
      %814 = vmatpush2.bf16.msra.mxu0 0
      %815 = vmatprep.subr.bf16.mxu0 0
      %816 = vmatpush2.bf16.msra.mxu0 0
      %817 = vmatprep.subr.bf16.mxu0 0
      %818 = vmatpush2.bf16.msra.mxu0 0
      %819 = vmatprep.subr.bf16.mxu0 0
      %820 = vmatpush2.bf16.msra.mxu0 0
      %821 = vmatprep.mubr.bf16.mxu0 0
      %822 = vmatmul.mubr.bf16.gmra.mxu0 %v788
      %v823 = vpop.f32.mrf.mxu0
      %v824 = vadd.f32 %v332, %v823
      %v825 = vpop.f32.mrf.mxu0
      %v826 = vpop.f32.mrf.mxu0
      %v827 = vadd.f32 %v335, %v826
      %v828 = vpop.f32.mrf.mxu0
      %829 = vdwg.mxu0
      %v830 = vadd.f32 %v824, 0.8
      %v831 = vadd.f32 %v827, 0.8
      %v832 = vtanh.pop %v830
      %v833 = vtanh.pop %v831
      %v834 = vmul.f32 %v832, 0.1
      %v835 = vmul.f32 %v833, 0.1
      %v836 = vadd.f32 %v786, %v834
      %v837 = vadd.f32 %v787, %v835
      %v838 = vpack.c.bf16 %v837, %v836
      %839 = vmatprep.subr.bf16.mxu0 0
      %840 = vmatpush1.bf16.msra.mxu0 %v380
      %841 = vmatprep.subr.bf16.mxu0 0
      %842 = vmatpush1.bf16.msra.mxu0 %v379
      %843 = vmatprep.subr.bf16.mxu0 0
      %844 = vmatpush1.bf16.msra.mxu0 %v378
      %845 = vmatprep.subr.bf16.mxu0 0
      %846 = vmatpush1.bf16.msra.mxu0 %v377
      %847 = vmatprep.subr.bf16.mxu0 0
      %848 = vmatpush1.bf16.msra.mxu0 %v376
      %849 = vmatprep.subr.bf16.mxu0 0
      %850 = vmatpush1.bf16.msra.mxu0 %v375
      %851 = vmatprep.subr.bf16.mxu0 0
      %852 = vmatpush1.bf16.msra.mxu0 %v374
      %853 = vmatprep.subr.bf16.mxu0 0
      %854 = vmatpush1.bf16.msra.mxu0 %v373
      %855 = vmatprep.subr.bf16.mxu0 0
      %856 = vmatpush2.bf16.msra.mxu0 0
      %857 = vmatprep.subr.bf16.mxu0 0
      %858 = vmatpush2.bf16.msra.mxu0 0
      %859 = vmatprep.subr.bf16.mxu0 0
      %860 = vmatpush2.bf16.msra.mxu0 0
      %861 = vmatprep.subr.bf16.mxu0 0
      %862 = vmatpush2.bf16.msra.mxu0 0
      %863 = vmatprep.subr.bf16.mxu0 0
      %864 = vmatpush2.bf16.msra.mxu0 0
      %865 = vmatprep.subr.bf16.mxu0 0
      %866 = vmatpush2.bf16.msra.mxu0 0
      %867 = vmatprep.subr.bf16.mxu0 0
      %868 = vmatpush2.bf16.msra.mxu0 0
      %869 = vmatprep.subr.bf16.mxu0 0
      %870 = vmatpush2.bf16.msra.mxu0 0
      %871 = vmatprep.mubr.bf16.mxu0 0
      %872 = vmatmul.mubr.bf16.gmra.mxu0 %v838
      %v873 = vpop.f32.mrf.mxu0
      %v874 = vadd.f32 %v332, %v873
      %v875 = vpop.f32.mrf.mxu0
      %v876 = vpop.f32.mrf.mxu0
      %v877 = vadd.f32 %v335, %v876
      %v878 = vpop.f32.mrf.mxu0
      %879 = vdwg.mxu0
      %v880 = vadd.f32 %v874, 0.90000004
      %v881 = vadd.f32 %v877, 0.90000004
      %v882 = vtanh.pop %v880
      %v883 = vtanh.pop %v881
      %v884 = vmul.f32 %v882, 0.1
      %v885 = vmul.f32 %v883, 0.1
      %v886 = vadd.f32 %v836, %v884
      %v887 = vadd.f32 %v837, %v885
      %v888 = vmul.f32 %v886, 7.0
      %v889 = vmul.f32 %v887, 7.0
      %v890 = vadd.f32 %v888, -5.0
      %v891 = vadd.f32 %v889, -5.0
      %892 = vst [vmem:[%s248] sm:$0xff] %v890
      %893 = vst [vmem:[%s248 + $0x8] sm:$0xff] %v891
      %s894 = smul.u32 2, %s16
      %p895 = scmp.lt.s32.totalorder %s894, 3
      %s896 = scalar_select %p895, %s894, 3
      %s897 = smul.addr %s896, 8
      %s898 = scalar_lea.vmem %s5, %s897
      // Predicated region
      $region41: #{rectified_flow_forward.1} parent=39 // pred_check
        %p899 = pneg %p149
      $region42: #{rectified_flow_forward.1} parent=39 // pred_check_branch
        %901 = sbr.rel (%p899) target = $region44
      $region43: #{rectified_flow_forward.1} parent=39 // pred_region
        %s902 = smul.u32 2, %s16
      $region44: #{rectified_flow_forward.1} parent=39 // pred_fallthru
        _
    $region40: #{rectified_flow_forward.1} parent=5 // pred_fallthru
      _
    %p903 = scmp.le.s32.totalorder 2, %s11
    // Predicated region
    $region45: #{rectified_flow_forward.1} parent=5 // pred_check
      %p904 = pneg %p903
    $region46: #{rectified_flow_forward.1} parent=5 // pred_check_branch
      %906 = sbr.rel (%p904) target = $region48
    $region47: #{rectified_flow_forward.1} parent=5 // pred_region
      %s907 = ssub.s32 %s11, 2
      // Predicated region
      $region49: #{rectified_flow_forward.1} parent=47 // pred_check
        %p908 = pneg %p155
      $region50: #{rectified_flow_forward.1} parent=47 // pred_check_branch
        %910 = sbr.rel (%p908) target = $region52
      $region51: #{rectified_flow_forward.1} parent=47 // pred_region
        %s911 = smul.u32 2, %s17
        %p912 = scmp.lt.s32.totalorder %s911, 3
        %s913 = scalar_select %p912, %s911, 3
        %s914 = smul.addr %s913, 8
        %s915 = scalar_lea.vmem %s5, %s914
      $region52: #{rectified_flow_forward.1} parent=47 // pred_fallthru
        _
    $region48: #{rectified_flow_forward.1} parent=5 // pred_fallthru
      _
  $region6: #{rectified_flow_forward.1} parent=0 // loop_footer
    %s15 = sadd.s32 1, %s11
  $region7: #{rectified_flow_forward.1} parent=0 // loop_footer_branch
    %10 = sbr.rel target = $region3
  $region8: #{rectified_flow_forward.1} parent=0 // loop_exit
    _

</llo_original>
